<compile_context>
chip_gen: v7x
topology: tpu7x:2x2x1
jax: 0.10.0
libtpu: 0.0.40
codegen_flags: <defaults>
</compile_context>

<pallas_src>
import numpy as np
import jax
import jax.numpy as jnp
from jax.experimental import pallas as pl
from jax.experimental.pallas import tpu as pltpu

_LANES = 128
_TARGET_TILE_BYTES = 2 * 1024 * 1024   # per-input, per-pipeline-buffer budget
_VMEM_LIMIT_BYTES = 48 * 1024 * 1024   # 4 inputs x 2 bufs x 2 MiB ~= 16 MiB used


def _mse_fused_kernel(t_ref, mu_ref, sc_ref, n_ref, out_ref):
    """Fused: sample = mu + sc * noise; accumulate per-example sum((t - sample)^2).

    t_ref, mu_ref, sc_ref, n_ref : (1, rows_t, 128) VMEM tiles
    out_ref                      : (1, 1, 128) lane-wise partial-sum accumulator,
                                   resident across the reduction grid axis.
    """
    k = pl.program_id(1)

    @pl.when(k == 0)
    def _():
        out_ref[...] = jnp.zeros_like(out_ref)

    t = t_ref[...].astype(jnp.float32)
    sample = (mu_ref[...].astype(jnp.float32)
              + sc_ref[...].astype(jnp.float32) * n_ref[...].astype(jnp.float32))
    diff = t - sample
    # Reduce over the sublane/row axis only; keep 128 lanes (lane-dense store).
    out_ref[...] += jnp.sum(diff * diff, axis=1, keepdims=True)


def fused_sq_err_per_example(targets, dist_mean, dist_scale, noise):
    """per_example[b] = sum_d (targets[b,d] - (mean[b,d] + scale[b,d]*noise[b,d]))**2."""
    B = targets.shape[0]
    D = int(np.prod(targets.shape[1:]))

    itemsize = max(jnp.dtype(x.dtype).itemsize
                   for x in (targets, dist_mean, dist_scale, noise))

    rows_total = -(-D // _LANES)                                   # ceil(D / 128)
    target_rows = max(8, (_TARGET_TILE_BYTES // (_LANES * itemsize)) // 8 * 8)
    rows_t = int(min(target_rows, -(-rows_total // 8) * 8))        # multiple of 8
    rows_pad = -(-rows_total // rows_t) * rows_t                   # multiple of rows_t
    padded_len = rows_pad * _LANES
    n_k = rows_pad // rows_t

    def prep(x):
        x2 = x.reshape(B, D)
        if padded_len != D:
            # Zero padding contributes exactly 0 to the squared error
            # (targets, mean, scale, noise are all padded with zeros).
            x2 = jnp.pad(x2, ((0, 0), (0, padded_len - D)))
        return x2.reshape(B, rows_pad, _LANES)

    in_spec = pl.BlockSpec((1, rows_t, _LANES), lambda b, k: (b, k, 0))

    out = pl.pallas_call(
        _mse_fused_kernel,
        out_shape=jax.ShapeDtypeStruct((B, 1, _LANES), jnp.float32),
        grid=(B, n_k),
        in_specs=[in_spec, in_spec, in_spec, in_spec],
        out_specs=pl.BlockSpec((1, 1, _LANES), lambda b, k: (b, 0, 0)),
        compiler_params=pltpu.CompilerParams(
            dimension_semantics=("parallel", "arbitrary"),  # batch || , reduction seq
            vmem_limit_bytes=_VMEM_LIMIT_BYTES,
        ),
    )(prep(targets), prep(dist_mean), prep(dist_scale), prep(noise))

    # Tiny trailing lane reduction (B x 128) done in XLA.
    return jnp.sum(out.reshape(B, _LANES), axis=-1)


class MSELossPallas:
    """Pallas port of MSELoss.  The Distribution is represented by (mean, scale)
    of a Normal; the reparameterized sample and the squared-error reduction are
    fused inside the Pallas kernel (only the Gaussian noise draw is JAX glue)."""

    def __init__(self, data_shape):
        self.data_shape = data_shape  # e.g. (C, H, W)

    def __call__(self, targets, dist_mean, dist_scale, key, global_batch_size=128):
        batch_shape = dist_mean.shape              # distribution.batch_shape
        targets = targets.reshape(batch_shape)

        # distribution.sample(): standard-normal noise is drawn here (glue);
        # mean + scale * noise happens inside the kernel (never hits HBM).
        noise = jax.random.normal(key, batch_shape, dtype=dist_mean.dtype)

        per_example_loss = fused_sq_err_per_example(
            targets, dist_mean, dist_scale, noise)                 # (B,)

        D = int(np.prod(batch_shape[1:]))
        scalar = global_batch_size * np.prod(self.data_shape)
        loss = jnp.sum(per_example_loss) / scalar
        avg_loss = jnp.sum(per_example_loss / float(D)) / (global_batch_size * np.log(2.0))
        return loss, avg_loss


def _reference(targets, sample, data_shape, global_batch_size):
    B = targets.shape[0]
    sq = (targets.astype(jnp.float32) - sample.astype(jnp.float32)) ** 2
    per_example = jnp.sum(sq.reshape(B, -1), axis=1)
    D = int(np.prod(targets.shape[1:]))
    loss = jnp.sum(per_example) / (global_batch_size * np.prod(data_shape))
    avg_loss = jnp.sum(per_example / D) / (global_batch_size * np.log(2.0))
    return loss, avg_loss


if __name__ == "__main__":
    # Small shapes consistent with the module: batch=2, data_shape=(4, 16, 16).
    B = 2
    data_shape = (4, 16, 16)
    full_shape = (B,) + data_shape          # NCHW

    key = jax.random.PRNGKey(0)
    k_t, k_mu, k_sc, k_sample = jax.random.split(key, 4)

    targets = jax.random.normal(k_t, full_shape, dtype=jnp.float32)
    dist_mean = jax.random.normal(k_mu, full_shape, dtype=jnp.float32)
    dist_scale = 0.1 + jax.nn.softplus(
        jax.random.normal(k_sc, full_shape, dtype=jnp.float32))

    mod = MSELossPallas(data_shape)
    loss, avg_loss = mod(targets, dist_mean, dist_scale, k_sample,
                         global_batch_size=128)
    jax.block_until_ready((loss, avg_loss))

    # Reference: same PRNG key -> identical noise -> identical reparameterized sample.
    noise = jax.random.normal(k_sample, full_shape, dtype=dist_mean.dtype)
    sample = dist_mean + dist_scale * noise
    ref_loss, ref_avg = _reference(targets, sample, data_shape, 128)

    assert np.allclose(np.asarray(loss), np.asarray(ref_loss), rtol=1e-5, atol=1e-5)
    assert np.allclose(np.asarray(avg_loss), np.asarray(ref_avg), rtol=1e-5, atol=1e-5)

    print("KERNEL_OK")
</pallas_src>

<mosaic_0001>
module attributes {stable_mosaic.version = 11 : i64} {
  func.func @_mse_fused_kernel(%arg0: i32, %arg1: i32, %arg2: memref<1x8x128xf32, #tpu.memory_space<vmem>>, %arg3: memref<1x8x128xf32, #tpu.memory_space<vmem>>, %arg4: memref<1x8x128xf32, #tpu.memory_space<vmem>>, %arg5: memref<1x8x128xf32, #tpu.memory_space<vmem>>, %arg6: memref<1x1x128xf32, #tpu.memory_space<vmem>>) attributes {dimension_semantics = [#tpu.dimension_semantics<parallel>, #tpu.dimension_semantics<arbitrary>], iteration_bounds = array<i64: 2, 1>, scalar_prefetch = 0 : i64, scratch_operands = 0 : i64, tpu.core_type = #tpu.core_type<tc>, window_params = [{transform_indices = @transform_0, window_bounds = array<i64: 1, 8, 128>}, {transform_indices = @transform_1, window_bounds = array<i64: 1, 8, 128>}, {transform_indices = @transform_2, window_bounds = array<i64: 1, 8, 128>}, {transform_indices = @transform_3, window_bounds = array<i64: 1, 8, 128>}, {transform_indices = @transform_4, window_bounds = array<i64: 1, 1, 128>}]} {
    %c0_i32 = arith.constant 0 : i32
    %0 = arith.cmpi eq, %arg1, %c0_i32 : i32
    %1 = arith.extui %0 : i1 to i32
    %c0_i32_0 = arith.constant 0 : i32
    %2 = arith.cmpi ne, %1, %c0_i32_0 : i32
    scf.if %2 {
      %cst_18 = arith.constant 0.000000e+00 : f32
      %16 = vector.broadcast %cst_18 : f32 to vector<1x1x128xf32>
      %c0_19 = arith.constant 0 : index
      %c0_20 = arith.constant 0 : index
      %c0_21 = arith.constant 0 : index
      %17 = vector.load %arg6[%c0_19, %c0_20, %c0_21] : memref<1x1x128xf32, #tpu.memory_space<vmem>>, vector<1x1x128xf32>
      tpu.vector_store %arg6[%c0_19, %c0_20, %c0_21], %16 {strides = array<i32>} : memref<1x1x128xf32, #tpu.memory_space<vmem>>, vector<1x1x128xf32>,
    } else {
    }
    %c0 = arith.constant 0 : index
    %c0_1 = arith.constant 0 : index
    %c0_2 = arith.constant 0 : index
    %3 = vector.load %arg2[%c0, %c0_1, %c0_2] : memref<1x8x128xf32, #tpu.memory_space<vmem>>, vector<1x8x128xf32>
    %c0_3 = arith.constant 0 : index
    %c0_4 = arith.constant 0 : index
    %c0_5 = arith.constant 0 : index
    %4 = vector.load %arg3[%c0_3, %c0_4, %c0_5] : memref<1x8x128xf32, #tpu.memory_space<vmem>>, vector<1x8x128xf32>
    %c0_6 = arith.constant 0 : index
    %c0_7 = arith.constant 0 : index
    %c0_8 = arith.constant 0 : index
    %5 = vector.load %arg4[%c0_6, %c0_7, %c0_8] : memref<1x8x128xf32, #tpu.memory_space<vmem>>, vector<1x8x128xf32>
    %c0_9 = arith.constant 0 : index
    %c0_10 = arith.constant 0 : index
    %c0_11 = arith.constant 0 : index
    %6 = vector.load %arg5[%c0_9, %c0_10, %c0_11] : memref<1x8x128xf32, #tpu.memory_space<vmem>>, vector<1x8x128xf32>
    %7 = arith.mulf %5, %6 : vector<1x8x128xf32>
    %8 = arith.addf %4, %7 : vector<1x8x128xf32>
    %9 = arith.subf %3, %8 : vector<1x8x128xf32>
    %c0_12 = arith.constant 0 : index
    %c0_13 = arith.constant 0 : index
    %c0_14 = arith.constant 0 : index
    %10 = vector.load %arg6[%c0_12, %c0_13, %c0_14] : memref<1x1x128xf32, #tpu.memory_space<vmem>>, vector<1x1x128xf32>
    %11 = arith.mulf %9, %9 : vector<1x8x128xf32>
    %cst = arith.constant dense<0.000000e+00> : vector<1x128xf32>
    %12 = vector.multi_reduction <add>, %11, %cst [1] : vector<1x8x128xf32> to vector<1x128xf32>
    %13 = vector.shape_cast %12 : vector<1x128xf32> to vector<1x1x128xf32>
    %14 = arith.addf %10, %13 : vector<1x1x128xf32>
    %c0_15 = arith.constant 0 : index
    %c0_16 = arith.constant 0 : index
    %c0_17 = arith.constant 0 : index
    %15 = vector.load %arg6[%c0_15, %c0_16, %c0_17] : memref<1x1x128xf32, #tpu.memory_space<vmem>>, vector<1x1x128xf32>
    tpu.vector_store %arg6[%c0_15, %c0_16, %c0_17], %14 {strides = array<i32>} : memref<1x1x128xf32, #tpu.memory_space<vmem>>, vector<1x1x128xf32>,
    return
  }
  func.func @transform_0(%arg0: i32, %arg1: i32) -> (i32, i32, i32) {
    %c0_i32 = arith.constant 0 : i32
    %c0_i32_0 = arith.constant 0 : i32
    return %arg0, %arg1, %c0_i32 : i32, i32, i32
  }
  func.func @transform_1(%arg0: i32, %arg1: i32) -> (i32, i32, i32) {
    %c0_i32 = arith.constant 0 : i32
    %c0_i32_0 = arith.constant 0 : i32
    return %arg0, %arg1, %c0_i32 : i32, i32, i32
  }
  func.func @transform_2(%arg0: i32, %arg1: i32) -> (i32, i32, i32) {
    %c0_i32 = arith.constant 0 : i32
    %c0_i32_0 = arith.constant 0 : i32
    return %arg0, %arg1, %c0_i32 : i32, i32, i32
  }
  func.func @transform_3(%arg0: i32, %arg1: i32) -> (i32, i32, i32) {
    %c0_i32 = arith.constant 0 : i32
    %c0_i32_0 = arith.constant 0 : i32
    return %arg0, %arg1, %c0_i32 : i32, i32, i32
  }
  func.func @transform_4(%arg0: i32, %arg1: i32) -> (i32, i32, i32) {
    %c0_i32 = arith.constant 0 : i32
    %c0_i32_0 = arith.constant 0 : i32
    %c0_i32_1 = arith.constant 0 : i32
    return %arg0, %c0_i32, %c0_i32_0 : i32, i32, i32
  }
}

</mosaic_0001>

<llo_original>
// kernel: tpu_custom_call.1
$region0: #{tpu_custom_call.1}
  #allocation0 [shape = 'u32[]', space=smem, size = 0x4, offset = 0x4, fixed_abs, tag = 'smem constant byte address 0x4 - core index']
  #allocation1 [shape = 'u32[144,128]{1,0:T(1,128)}', space=vmem, size = 0x12000, scoped, tag = 'internal scratch']
  %s0 = inlined_call_operand.hbm [shape: f32[2,8,128], index: 0, kind: input, shape index: {}]
  %s1 = inlined_call_operand.hbm [shape: f32[2,8,128], index: 1, kind: input, shape index: {}]
  %s2 = inlined_call_operand.hbm [shape: f32[2,8,128], index: 2, kind: input, shape index: {}]
  %s3 = inlined_call_operand.hbm [shape: f32[2,8,128], index: 3, kind: input, shape index: {}]
  %s4 = inlined_call_operand.hbm [shape: f32[2,1,128], index: 4, kind: output, shape index: {}]
  %s5 = sld [smem:[#allocation0]]
  $region69: #{tpu_custom_call.1} parent=0
    _
  %s7 = ssub.s32 1, %s5
  %s8 = scalar_select 0, %s7, %s5
  $region1: #{tpu_custom_call.1} parent=0
    #allocation2 [shape = 'u8[8192]{0}', space=vmem, size = 0x2000, scoped, tag = 'input window, operand 0']
    #allocation3 [shape = 's32[2]{0}', space=sflag, size = 0x8, scoped, tag = 'scoped memory for tpu_custom_call.1']
    #allocation4 [shape = 's32[2]{0}', space=sflag, size = 0x8, scoped, tag = 'scoped memory for tpu_custom_call.1']
    #allocation5 [shape = 'u8[8192]{0}', space=vmem, size = 0x2000, scoped, tag = 'input window, operand 1']
    #allocation6 [shape = 's32[2]{0}', space=sflag, size = 0x8, scoped, tag = 'scoped memory for tpu_custom_call.1']
    #allocation7 [shape = 'u8[8192]{0}', space=vmem, size = 0x2000, scoped, tag = 'input window, operand 2']
    #allocation8 [shape = 'u8[8192]{0}', space=vmem, size = 0x2000, scoped, tag = 'input window, operand 3']
    #allocation9 [shape = 's32[2]{0}', space=sflag, size = 0x8, scoped, tag = 'scoped memory for tpu_custom_call.1']
    #allocation10 [shape = 'u8[1024]{0}', space=vmem, size = 0x400, scoped, tag = 'output window, operand 0']
    %9 = vsyncpa [#allocation3], 0
    %s10 = scalar_lea.sflag [#allocation3], 1
    %11 = vsyncpa %s10, 0
    %12 = vsyncpa [#allocation6], 0
    %s13 = scalar_lea.sflag [#allocation6], 1
    %14 = vsyncpa %s13, 0
    %15 = vsyncpa [#allocation9], 0
    %s16 = scalar_lea.sflag [#allocation9], 1
    %17 = vsyncpa %s16, 0
    %18 = vsyncpa [#allocation4], 0
    %s19 = scalar_lea.sflag [#allocation4], 1
    %20 = vsyncpa %s19, 0
    loop: start=0, step=1, limit=4
    $region2: #{tpu_custom_call.1} parent=1 // loop_pre_header
      _
    $region3: #{tpu_custom_call.1} parent=1 // loop_header
      %s22 = sphi 0, %s26
      %p23 = scmp.ge.s32.totalorder %s22, 4
      %s29 = sphi 0, %s41
      %s30 = sphi 0, %s37
      %s31 = sphi 0, %s29
      %s32 = sphi 0, %s30
      %s33 = sphi 0, %s31
      %s34 = sphi 0, %s32
      %s46 = sphi 0, %s48
      %s49 = sphi 0, %s46
      %s50 = sphi 0, %s49
      %s66 = sphi 0, %s50
      %s74 = sphi 0, %s76
      %s77 = sphi 0, %s74
      %s78 = sphi 0, %s77
      %s94 = sphi 0, %s78
      %s102 = sphi 0, %s104
      %s105 = sphi 0, %s102
      %s106 = sphi 0, %s105
      %s122 = sphi 0, %s106
      %s130 = sphi 0, %s132
      %s133 = sphi 0, %s130
      %s134 = sphi 0, %s133
      %s150 = sphi 0, %s134
      %s156 = sphi 0, %s158
      %s159 = sphi 0, %s156
      %s160 = sphi 0, %s159
      %s176 = sphi 0, %s160
    $region4: #{tpu_custom_call.1} parent=1 // loop_header_branch
      %25 = sbr.rel (%p23) target = $region8
    $region5: #{tpu_custom_call.1} parent=1 // loop_body
      %s27 = ssub.s32 %s22, 1
      %s28 = ssub.s32 %s22, 2
      %s35 = sadd.s32 1, %s30
      %p36 = scmp.ge.s32.totalorder %s35, 1
      %s37 = scalar_select %p36, 0, %s35
      %s38 = sadd.s32 1, %s29
      %s39 = scalar_select %p36, %s38, %s29
      %p40 = scmp.ge.s32.totalorder %s39, 2
      %s41 = scalar_select %p40, 0, %s39
      %s42 = ssub.s32 %s29, %s41
      %s43 = ssub.s32 %s30, %s37
      %s44 = sor.u32 %s42, %s43
      %p45 = scmp.eq.s32.totalorder %s44, 0
      %s47 = sadd.s32 %s46, 1
      %s48 = scalar_select %p45, %s46, %s47
      %p51 = pneg %p45
      %p52 = scmp.eq.s32.totalorder %s22, 1
      %p53 = por %p51, %p52
      %p54 = scmp.ne.s32.totalorder %s46, %s49
      %p55 = scmp.eq.s32.totalorder %s22, 0
      %p56 = por %p54, %p55
      %p57 = scmp.ne.s32.totalorder %s46, %s49
      %p58 = scmp.eq.s32.totalorder %s27, 1
      %p59 = por %p57, %p58
      %p60 = scmp.ne.s32.totalorder %s49, %s50
      %p61 = scmp.eq.s32.totalorder %s27, 0
      %p62 = por %p60, %p61
      %p63 = scmp.ne.s32.totalorder %s49, %s50
      %p64 = scmp.eq.s32.totalorder %s28, 1
      %p65 = por %p63, %p64
      %p67 = scmp.ne.s32.totalorder %s50, %s66
      %p68 = scmp.eq.s32.totalorder %s28, 0
      %p69 = por %p67, %p68
      %s70 = ssub.s32 %s29, %s41
      %s71 = ssub.s32 %s30, %s37
      %s72 = sor.u32 %s70, %s71
      %p73 = scmp.eq.s32.totalorder %s72, 0
      %s75 = sadd.s32 %s74, 1
      %s76 = scalar_select %p73, %s74, %s75
      %p79 = pneg %p73
      %p80 = scmp.eq.s32.totalorder %s22, 1
      %p81 = por %p79, %p80
      %p82 = scmp.ne.s32.totalorder %s74, %s77
      %p83 = scmp.eq.s32.totalorder %s22, 0
      %p84 = por %p82, %p83
      %p85 = scmp.ne.s32.totalorder %s74, %s77
      %p86 = scmp.eq.s32.totalorder %s27, 1
      %p87 = por %p85, %p86
      %p88 = scmp.ne.s32.totalorder %s77, %s78
      %p89 = scmp.eq.s32.totalorder %s27, 0
      %p90 = por %p88, %p89
      %p91 = scmp.ne.s32.totalorder %s77, %s78
      %p92 = scmp.eq.s32.totalorder %s28, 1
      %p93 = por %p91, %p92
      %p95 = scmp.ne.s32.totalorder %s78, %s94
      %p96 = scmp.eq.s32.totalorder %s28, 0
      %p97 = por %p95, %p96
      %s98 = ssub.s32 %s29, %s41
      %s99 = ssub.s32 %s30, %s37
      %s100 = sor.u32 %s98, %s99
      %p101 = scmp.eq.s32.totalorder %s100, 0
      %s103 = sadd.s32 %s102, 1
      %s104 = scalar_select %p101, %s102, %s103
      %p107 = pneg %p101
      %p108 = scmp.eq.s32.totalorder %s22, 1
      %p109 = por %p107, %p108
      %p110 = scmp.ne.s32.totalorder %s102, %s105
      %p111 = scmp.eq.s32.totalorder %s22, 0
      %p112 = por %p110, %p111
      %p113 = scmp.ne.s32.totalorder %s102, %s105
      %p114 = scmp.eq.s32.totalorder %s27, 1
      %p115 = por %p113, %p114
      %p116 = scmp.ne.s32.totalorder %s105, %s106
      %p117 = scmp.eq.s32.totalorder %s27, 0
      %p118 = por %p116, %p117
      %p119 = scmp.ne.s32.totalorder %s105, %s106
      %p120 = scmp.eq.s32.totalorder %s28, 1
      %p121 = por %p119, %p120
      %p123 = scmp.ne.s32.totalorder %s106, %s122
      %p124 = scmp.eq.s32.totalorder %s28, 0
      %p125 = por %p123, %p124
      %s126 = ssub.s32 %s29, %s41
      %s127 = ssub.s32 %s30, %s37
      %s128 = sor.u32 %s126, %s127
      %p129 = scmp.eq.s32.totalorder %s128, 0
      %s131 = sadd.s32 %s130, 1
      %s132 = scalar_select %p129, %s130, %s131
      %p135 = pneg %p129
      %p136 = scmp.eq.s32.totalorder %s22, 1
      %p137 = por %p135, %p136
      %p138 = scmp.ne.s32.totalorder %s130, %s133
      %p139 = scmp.eq.s32.totalorder %s22, 0
      %p140 = por %p138, %p139
      %p141 = scmp.ne.s32.totalorder %s130, %s133
      %p142 = scmp.eq.s32.totalorder %s27, 1
      %p143 = por %p141, %p142
      %p144 = scmp.ne.s32.totalorder %s133, %s134
      %p145 = scmp.eq.s32.totalorder %s27, 0
      %p146 = por %p144, %p145
      %p147 = scmp.ne.s32.totalorder %s133, %s134
      %p148 = scmp.eq.s32.totalorder %s28, 1
      %p149 = por %p147, %p148
      %p151 = scmp.ne.s32.totalorder %s134, %s150
      %p152 = scmp.eq.s32.totalorder %s28, 0
      %p153 = por %p151, %p152
      %s154 = ssub.s32 %s29, %s41
      %p155 = scmp.eq.s32.totalorder %s154, 0
      %s157 = sadd.s32 %s156, 1
      %s158 = scalar_select %p155, %s156, %s157
      %p161 = pneg %p155
      %p162 = scmp.eq.s32.totalorder %s22, 1
      %p163 = por %p161, %p162
      %p164 = scmp.ne.s32.totalorder %s156, %s159
      %p165 = scmp.eq.s32.totalorder %s22, 0
      %p166 = por %p164, %p165
      %p167 = scmp.ne.s32.totalorder %s156, %s159
      %p168 = scmp.eq.s32.totalorder %s27, 1
      %p169 = por %p167, %p168
      %p170 = scmp.ne.s32.totalorder %s159, %s160
      %p171 = scmp.eq.s32.totalorder %s27, 0
      %p172 = por %p170, %p171
      %p173 = scmp.ne.s32.totalorder %s159, %s160
      %p174 = scmp.eq.s32.totalorder %s28, 1
      %p175 = por %p173, %p174
      %p177 = scmp.ne.s32.totalorder %s160, %s176
      %p178 = scmp.eq.s32.totalorder %s28, 0
      %p179 = por %p177, %p178
      %p180 = scmp.le.s32.totalorder 1, %s22
      %p181 = scmp.lt.s32.totalorder %s22, 3
      %p182 = pnand %p180, %p181
      %p183 = pneg %p182
      // Predicated region
      $region9: #{tpu_custom_call.1} parent=5 // pred_check
        _
      $region10: #{tpu_custom_call.1} parent=5 // pred_check_branch
        %185 = sbr.rel (%p182) target = $region12
      $region11: #{tpu_custom_call.1} parent=5 // pred_region
        %s186 = ssub.s32 %s22, 1
      $region12: #{tpu_custom_call.1} parent=5 // pred_fallthru
        _
      %p187 = scmp.lt.s32.totalorder %s22, 2
      // Predicated region
      $region13: #{tpu_custom_call.1} parent=5 // pred_check
        %p188 = pneg %p187
      $region14: #{tpu_custom_call.1} parent=5 // pred_check_branch
        %190 = sbr.rel (%p188) target = $region16
      $region15: #{tpu_custom_call.1} parent=5 // pred_region
        // Predicated region
        $region17: #{tpu_custom_call.1} parent=15 // pred_check
          %p191 = pneg %p56
        $region18: #{tpu_custom_call.1} parent=15 // pred_check_branch
          %193 = sbr.rel (%p191) target = $region20
        $region19: #{tpu_custom_call.1} parent=15 // pred_region
          %s194 = sand.u32 %s46, 1
          %s195 = scalar_lea.sflag [#allocation3], %s194
          %s196 = sand.u32 %s46, 1
          %s197 = smul.addr %s196, 8
          %s198 = scalar_lea.vmem [#allocation2], %s197
          %s200 = ssub.s32 128, 128
          %201 = vsyncadd %s195, %s200
          %s202 = sadd.s32 %s30, %s29
          %s203 = smul.addr %s202, 128
          %s204 = scalar_lea.hbm %s0, %s203
          %s206 = sshll.u32 %s198, 4
          %s207 = int_to_ptr.vmem [resolvable:$true] %s206
          %209 = dma.hbm_to_vmem [thread:$0]  %s204, 128, %s207, %s195
        $region20: #{tpu_custom_call.1} parent=15 // pred_fallthru
          _
        // Predicated region
        $region21: #{tpu_custom_call.1} parent=15 // pred_check
          %p210 = pneg %p84
        $region22: #{tpu_custom_call.1} parent=15 // pred_check_branch
          %212 = sbr.rel (%p210) target = $region24
        $region23: #{tpu_custom_call.1} parent=15 // pred_region
          %s213 = sand.u32 %s22, 1
          %s214 = scalar_lea.sflag [#allocation6], %s213
          %s215 = sand.u32 %s74, 1
          %s216 = smul.addr %s215, 8
          %s217 = scalar_lea.vmem [#allocation5], %s216
          %s219 = ssub.s32 128, 128
          %220 = vsyncadd %s214, %s219
          %s221 = sadd.s32 %s30, %s29
          %s222 = smul.addr %s221, 128
          %s223 = scalar_lea.hbm %s1, %s222
          %s225 = sshll.u32 %s217, 4
          %s226 = int_to_ptr.vmem [resolvable:$true] %s225
          %228 = dma.hbm_to_vmem [thread:$0]  %s223, 128, %s226, %s214
        $region24: #{tpu_custom_call.1} parent=15 // pred_fallthru
          _
        // Predicated region
        $region25: #{tpu_custom_call.1} parent=15 // pred_check
          %p229 = pneg %p112
        $region26: #{tpu_custom_call.1} parent=15 // pred_check_branch
          %231 = sbr.rel (%p229) target = $region28
        $region27: #{tpu_custom_call.1} parent=15 // pred_region
          %s232 = sand.u32 %s22, 1
          %s233 = scalar_lea.sflag [#allocation6], %s232
          %s234 = sand.u32 %s102, 1
          %s235 = smul.addr %s234, 8
          %s236 = scalar_lea.vmem [#allocation7], %s235
          %s238 = ssub.s32 128, 128
          %239 = vsyncadd %s233, %s238
          %s240 = sadd.s32 %s30, %s29
          %s241 = smul.addr %s240, 128
          %s242 = scalar_lea.hbm %s2, %s241
          %s244 = sshll.u32 %s236, 4
          %s245 = int_to_ptr.vmem [resolvable:$true] %s244
          %247 = dma.hbm_to_vmem [thread:$0]  %s242, 128, %s245, %s233
        $region28: #{tpu_custom_call.1} parent=15 // pred_fallthru
          _
        // Predicated region
        $region29: #{tpu_custom_call.1} parent=15 // pred_check
          %p248 = pneg %p140
        $region30: #{tpu_custom_call.1} parent=15 // pred_check_branch
          %250 = sbr.rel (%p248) target = $region32
        $region31: #{tpu_custom_call.1} parent=15 // pred_region
          %s251 = sand.u32 %s130, 1
          %s252 = scalar_lea.sflag [#allocation9], %s251
          %s253 = sand.u32 %s130, 1
          %s254 = smul.addr %s253, 8
          %s255 = scalar_lea.vmem [#allocation8], %s254
          %s257 = ssub.s32 128, 128
          %258 = vsyncadd %s252, %s257
          %s259 = sadd.s32 %s30, %s29
          %s260 = smul.addr %s259, 128
          %s261 = scalar_lea.hbm %s3, %s260
          %s263 = sshll.u32 %s255, 4
          %s264 = int_to_ptr.vmem [resolvable:$true] %s263
          %266 = dma.hbm_to_vmem [thread:$0]  %s261, 128, %s264, %s252
        $region32: #{tpu_custom_call.1} parent=15 // pred_fallthru
          _
      $region16: #{tpu_custom_call.1} parent=5 // pred_fallthru
        _
      %p267 = scmp.le.s32.totalorder 1, %s22
      %p268 = scmp.lt.s32.totalorder %s22, 3
      %p269 = pnand %p267, %p268
      %p270 = pneg %p269
      // Predicated region
      $region33: #{tpu_custom_call.1} parent=5 // pred_check
        _
      $region34: #{tpu_custom_call.1} parent=5 // pred_check_branch
        %272 = sbr.rel (%p269) target = $region36
      $region35: #{tpu_custom_call.1} parent=5 // pred_region
        %s273 = ssub.s32 %s22, 1
        %s274 = sand.u32 %s49, 1
        %s275 = scalar_lea.sflag [#allocation3], %s274
        %s276 = sand.u32 %s49, 1
        %s277 = smul.addr %s276, 8
        %s278 = scalar_lea.vmem [#allocation2], %s277
        // Predicated region
        $region37: #{tpu_custom_call.1} parent=35 // pred_check
          %p279 = pneg %p62
        $region38: #{tpu_custom_call.1} parent=35 // pred_check_branch
          %281 = sbr.rel (%p279) target = $region40
        $region39: #{tpu_custom_call.1} parent=35 // pred_region
          %282 = dma.done %s275, 128
        $region40: #{tpu_custom_call.1} parent=35 // pred_fallthru
          _
        %s283 = sand.u32 %s27, 1
        %s284 = scalar_lea.sflag [#allocation6], %s283
        %s285 = sand.u32 %s77, 1
        %s286 = smul.addr %s285, 8
        %s287 = scalar_lea.vmem [#allocation5], %s286
        // Predicated region
        $region41: #{tpu_custom_call.1} parent=35 // pred_check
          %p288 = pneg %p90
        $region42: #{tpu_custom_call.1} parent=35 // pred_check_branch
          %290 = sbr.rel (%p288) target = $region44
        $region43: #{tpu_custom_call.1} parent=35 // pred_region
          %291 = dma.done %s284, 128
        $region44: #{tpu_custom_call.1} parent=35 // pred_fallthru
          _
        %s292 = sand.u32 %s27, 1
        %s293 = scalar_lea.sflag [#allocation6], %s292
        %s294 = sand.u32 %s105, 1
        %s295 = smul.addr %s294, 8
        %s296 = scalar_lea.vmem [#allocation7], %s295
        // Predicated region
        $region45: #{tpu_custom_call.1} parent=35 // pred_check
          %p297 = pneg %p118
        $region46: #{tpu_custom_call.1} parent=35 // pred_check_branch
          %299 = sbr.rel (%p297) target = $region48
        $region47: #{tpu_custom_call.1} parent=35 // pred_region
          %300 = dma.done %s293, 128
        $region48: #{tpu_custom_call.1} parent=35 // pred_fallthru
          _
        %s301 = sand.u32 %s133, 1
        %s302 = scalar_lea.sflag [#allocation9], %s301
        %s303 = sand.u32 %s133, 1
        %s304 = smul.addr %s303, 8
        %s305 = scalar_lea.vmem [#allocation8], %s304
        // Predicated region
        $region49: #{tpu_custom_call.1} parent=35 // pred_check
          %p306 = pneg %p146
        $region50: #{tpu_custom_call.1} parent=35 // pred_check_branch
          %308 = sbr.rel (%p306) target = $region52
        $region51: #{tpu_custom_call.1} parent=35 // pred_region
          %309 = dma.done %s302, 128
        $region52: #{tpu_custom_call.1} parent=35 // pred_fallthru
          _
        %s310 = sand.u32 %s49, 1
        %s311 = scalar_lea.sflag [#allocation3], %s310
        %s312 = sand.u32 %s49, 1
        %s313 = smul.addr %s312, 8
        %s314 = scalar_lea.vmem [#allocation2], %s313
        %p315 = pneg %p62
        %p316 = pneg %p59
        %s317 = sand.u32 %s27, 1
        %s318 = scalar_lea.sflag [#allocation6], %s317
        %s319 = sand.u32 %s77, 1
        %s320 = smul.addr %s319, 8
        %s321 = scalar_lea.vmem [#allocation5], %s320
        %p322 = pneg %p90
        %p323 = pneg %p87
        %s324 = sand.u32 %s27, 1
        %s325 = scalar_lea.sflag [#allocation6], %s324
        %s326 = sand.u32 %s105, 1
        %s327 = smul.addr %s326, 8
        %s328 = scalar_lea.vmem [#allocation7], %s327
        %p329 = pneg %p118
        %p330 = pneg %p115
        %s331 = sand.u32 %s133, 1
        %s332 = scalar_lea.sflag [#allocation9], %s331
        %s333 = sand.u32 %s133, 1
        %s334 = smul.addr %s333, 8
        %s335 = scalar_lea.vmem [#allocation8], %s334
        %p336 = pneg %p146
        %p337 = pneg %p143
        %p338 = pneg %p172
        %p339 = pneg %p169
        %s340 = sand.u32 %s159, 1
        %s341 = scalar_lea.sflag [#allocation4], %s340
        %s342 = sand.u32 %s159, 1
        %s343 = scalar_lea.vmem [#allocation10], %s342
        %p344 = scmp.eq.s32.totalorder %s32, 0
        // Predicated region
        $region53: #{tpu_custom_call.1} parent=35 // pred_check
          %p345 = pneg %p344
        $region54: #{tpu_custom_call.1} parent=35 // pred_check_branch
          %347 = sbr.rel (%p345) target = $region56
        $region55: #{tpu_custom_call.1} parent=35 // pred_region
          %348 = vst [vmem:[%s343] sm:$0x1] 0.0
        $region56: #{tpu_custom_call.1} parent=35 // pred_fallthru
          _
        %v349 = vld [vmem:[%s278] sm:$0xff]
        %v350 = vld [vmem:[%s287] sm:$0xff]
        %v351 = vld [vmem:[%s296] sm:$0xff]
        %v352 = vld [vmem:[%s305] sm:$0xff]
        %v353 = vmul.f32 %v351, %v352
        %v354 = vadd.f32 %v350, %v353
        %v355 = vsub.f32 %v349, %v354
        %v356 = vld [vmem:[%s343] sm:$0x1]
        %v357 = vmul.f32 %v355, %v355
        %v358 = vrot.slane %v357, 4
        %v359 = vadd.f32 %v357, %v358
        %v360 = vrot.slane %v359, 2
        %v361 = vadd.f32 %v359, %v360
        %v362 = vrot.slane %v361, 1
        %v363 = vadd.f32 %v361, %v362
        %v364 = vadd.f32 %v356, %v363
        %365 = vst [vmem:[%s343] sm:$0x1] %v364
        %s366 = sand.u32 %s159, 1
        %s367 = scalar_lea.sflag [#allocation4], %s366
        %s368 = sand.u32 %s159, 1
        %s369 = scalar_lea.vmem [#allocation10], %s368
        // Predicated region
        $region57: #{tpu_custom_call.1} parent=35 // pred_check
          %p370 = pneg %p169
        $region58: #{tpu_custom_call.1} parent=35 // pred_check_branch
          %372 = sbr.rel (%p370) target = $region60
        $region59: #{tpu_custom_call.1} parent=35 // pred_region
          %s374 = ssub.s32 16, 16
          %375 = vsyncadd %s367, %s374
          %s376 = smul.addr %s31, 16
          %s377 = scalar_lea.hbm %s4, %s376
          %s379 = sshll.u32 %s369, 4
          %s380 = int_to_ptr.vmem [resolvable:$true] %s379
          %382 = dma.vmem_to_hbm [thread:$0]  %s380, 16, %s377, %s367
        $region60: #{tpu_custom_call.1} parent=35 // pred_fallthru
          _
      $region36: #{tpu_custom_call.1} parent=5 // pred_fallthru
        _
      %p383 = scmp.le.s32.totalorder 2, %s22
      // Predicated region
      $region61: #{tpu_custom_call.1} parent=5 // pred_check
        %p384 = pneg %p383
      $region62: #{tpu_custom_call.1} parent=5 // pred_check_branch
        %386 = sbr.rel (%p384) target = $region64
      $region63: #{tpu_custom_call.1} parent=5 // pred_region
        %s387 = ssub.s32 %s22, 2
        // Predicated region
        $region65: #{tpu_custom_call.1} parent=63 // pred_check
          %p388 = pneg %p175
        $region66: #{tpu_custom_call.1} parent=63 // pred_check_branch
          %390 = sbr.rel (%p388) target = $region68
        $region67: #{tpu_custom_call.1} parent=63 // pred_region
          %s391 = sand.u32 %s160, 1
          %s392 = scalar_lea.sflag [#allocation4], %s391
          %s393 = sand.u32 %s160, 1
          %s394 = scalar_lea.vmem [#allocation10], %s393
          %395 = dma.done %s392, 16
        $region68: #{tpu_custom_call.1} parent=63 // pred_fallthru
          _
      $region64: #{tpu_custom_call.1} parent=5 // pred_fallthru
        _
    $region6: #{tpu_custom_call.1} parent=1 // loop_footer
      %s26 = sadd.s32 1, %s22
    $region7: #{tpu_custom_call.1} parent=1 // loop_footer_branch
      %21 = sbr.rel target = $region3
    $region8: #{tpu_custom_call.1} parent=1 // loop_exit
      _
    %396 = vsyncpa [#allocation3], 1
    %s397 = scalar_lea.sflag [#allocation3], 1
    %398 = vsyncpa %s397, 1
    %399 = vsyncpa [#allocation6], 1
    %s400 = scalar_lea.sflag [#allocation6], 1
    %401 = vsyncpa %s400, 1
    %402 = vsyncpa [#allocation9], 1
    %s403 = scalar_lea.sflag [#allocation9], 1
    %404 = vsyncpa %s403, 1
    %405 = vsyncpa [#allocation4], 1
    %s406 = scalar_lea.sflag [#allocation4], 1
    %407 = vsyncpa %s406, 1

</llo_original>
